<compile_context>
chip_gen: v5e
topology: v5e:2x2
jax: 0.10.0
libtpu: 0.0.40
codegen_flags: <defaults>
</compile_context>

<pallas_src>
import math

import jax
import jax.numpy as jnp
from jax.experimental import pallas as pl
from jax.experimental.pallas import tpu as pltpu

_MAX_TM = 8192   # batch-tile rows (large to amortize ~0.35 us/step overhead)
_TM_ALIGN = 32   # multiple of the strictest sublane minimum (f32:8 bf16:16 i8:32)


def _round_up(n, m):
    return ((n + m - 1) // m) * m


def _mlp_kernel(x_ref, w1_ref, b1_ref, w2_ref, b2_ref, o_ref):
    # fc1: (tm, in) @ (in, hid) on the MXU, f32 accumulate.
    h = jnp.dot(x_ref[...], w1_ref[...], preferred_element_type=jnp.float32)
    # bias + ReLU on the VPU.
    h = jnp.maximum(h + b1_ref[...], 0.0)
    # Only narrow the f32 activation when the weights themselves are a narrow
    # dtype (matches PyTorch's bf16 Linear behaviour; keeps full f32 otherwise).
    if w2_ref.dtype != jnp.float32:
        h = h.astype(w2_ref.dtype)
    # fc2: (tm, hid) @ (hid, out), f32 accumulate.
    out = jnp.dot(h, w2_ref[...], preferred_element_type=jnp.float32)
    o_ref[...] = (out + b2_ref[...]).astype(o_ref.dtype)
    # TODO(synk): on v5e, if profiling shows the single vector-store slot
    # saturating from spills of the (tm, hid) f32 intermediate, split the tile
    # into row sub-panels with an unrolled lax.fori_loop inside this body.


def score_combination_nn(x, w1, b1, w2, b2):
    """Forward pass of ScoreCombinationNN.

    x : (B, input_size)
    w1: (input_size, hidden_size)   b1: (1, hidden_size)
    w2: (hidden_size, output_size)  b2: (1, output_size)
    returns (B, output_size), same dtype as x.
    """
    B, in_size = x.shape
    hid = w1.shape[1]
    out_size = w2.shape[1]
    dtype = x.dtype
    itemsize = jnp.dtype(dtype).itemsize

    # --- batch tiling: ragged final block is masked by Pallas --------------
    tm = min(_MAX_TM, _round_up(B, _TM_ALIGN))
    grid = (pl.cdiv(B, tm),)

    # --- VMEM budget: 2x-buffered x/out tiles + resident params + f32 h ----
    vmem_bytes = (
        2 * tm * (in_size + out_size) * itemsize                    # pipelined tiles
        + 2 * (in_size * hid + hid + hid * out_size + out_size) * itemsize  # params
        + tm * hid * 4                                              # f32 intermediate
    )
    # Clamp to 48 MiB so there is headroom under v7x's 64 MiB physical VMEM.
    vmem_limit = int(min(max(2 * vmem_bytes, 16 << 20), 48 << 20))

    # Honest (unpadded) cost hint for the XLA scheduler.
    flops = 2 * B * (in_size * hid + hid * out_size)
    bytes_accessed = int(
        (x.size + w1.size + b1.size + w2.size + b2.size + B * out_size)
        * itemsize)

    return pl.pallas_call(
        _mlp_kernel,
        out_shape=jax.ShapeDtypeStruct((B, out_size), dtype),
        grid=grid,
        in_specs=[
            # x: tiled on batch; last dim == full array dim -> exempt from the
            # 128-lane divisibility rule, so no column padding is needed.
            pl.BlockSpec((tm, in_size), lambda i: (i, 0)),
            # Params: full-array blocks, constant index_map -> VMEM-resident.
            pl.BlockSpec((in_size, hid), lambda i: (0, 0)),
            pl.BlockSpec((1, hid), lambda i: (0, 0)),
            pl.BlockSpec((hid, out_size), lambda i: (0, 0)),
            pl.BlockSpec((1, out_size), lambda i: (0, 0)),
        ],
        out_specs=pl.BlockSpec((tm, out_size), lambda i: (i, 0)),
        compiler_params=pltpu.CompilerParams(
            dimension_semantics=("parallel",),
            vmem_limit_bytes=vmem_limit,
        ),
        cost_estimate=pl.CostEstimate(
            flops=flops, transcendentals=0, bytes_accessed=bytes_accessed),
    )(x, w1, b1, w2, b2)


def init_params(key, input_size, hidden_size, output_size, dtype=jnp.float32):
    """Deterministic init matching nn.Linear's U(-1/sqrt(fan_in), 1/sqrt(fan_in))."""
    k1, k2, k3, k4 = jax.random.split(key, 4)
    bound1 = 1.0 / math.sqrt(input_size)
    bound2 = 1.0 / math.sqrt(hidden_size)
    w1 = jax.random.uniform(k1, (input_size, hidden_size), dtype,
                            minval=-bound1, maxval=bound1)
    b1 = jax.random.uniform(k2, (1, hidden_size), dtype,
                            minval=-bound1, maxval=bound1)
    w2 = jax.random.uniform(k3, (hidden_size, output_size), dtype,
                            minval=-bound2, maxval=bound2)
    b2 = jax.random.uniform(k4, (1, output_size), dtype,
                            minval=-bound2, maxval=bound2)
    return w1, b1, w2, b2


def reference_forward(x, w1, b1, w2, b2):
    h = jnp.maximum(x @ w1 + b1, 0.0)
    return h @ w2 + b2


if __name__ == "__main__":
    input_size, hidden_size, output_size = 16, 32, 4
    key = jax.random.PRNGKey(0)
    kx, kp, kx2 = jax.random.split(key, 3)
    w1, b1, w2, b2 = init_params(kp, input_size, hidden_size, output_size)

    # Small case consistent with the module's usage (single, partially-masked block).
    batch = 8
    x = jax.random.normal(kx, (batch, input_size), jnp.float32)
    out = jax.block_until_ready(score_combination_nn(x, w1, b1, w2, b2))
    ref = reference_forward(x, w1, b1, w2, b2)
    assert out.shape == (batch, output_size)
    assert jnp.allclose(out, ref, atol=1e-5, rtol=1e-5)

    # Larger batch that is not a multiple of the tile alignment, to exercise
    # the ragged / masked-write path.
    batch2 = 600
    x2 = jax.random.normal(kx2, (batch2, input_size), jnp.float32)
    out2 = jax.block_until_ready(score_combination_nn(x2, w1, b1, w2, b2))
    ref2 = reference_forward(x2, w1, b1, w2, b2)
    assert out2.shape == (batch2, output_size)
    assert jnp.allclose(out2, ref2, atol=1e-4, rtol=1e-5)

    print("KERNEL_OK")
</pallas_src>

<mosaic_0001>
module attributes {stable_mosaic.version = 11 : i64} {
  func.func @_mlp_kernel(%arg0: i32, %arg1: memref<32x16xf32, #tpu.memory_space<vmem>>, %arg2: memref<16x32xf32, #tpu.memory_space<vmem>>, %arg3: memref<1x32xf32, #tpu.memory_space<vmem>>, %arg4: memref<32x4xf32, #tpu.memory_space<vmem>>, %arg5: memref<1x4xf32, #tpu.memory_space<vmem>>, %arg6: memref<32x4xf32, #tpu.memory_space<vmem>>) attributes {dimension_semantics = [#tpu.dimension_semantics<parallel>], iteration_bounds = array<i64: 1>, scalar_prefetch = 0 : i64, scratch_operands = 0 : i64, tpu.core_type = #tpu.core_type<tc>, window_params = [{transform_indices = @transform_0, window_bounds = array<i64: 32, 16>}, {pipeline_mode = #tpu.pipeline_mode<synchronous>, transform_indices = @transform_1, window_bounds = array<i64: 16, 32>}, {pipeline_mode = #tpu.pipeline_mode<synchronous>, transform_indices = @transform_2, window_bounds = array<i64: 1, 32>}, {pipeline_mode = #tpu.pipeline_mode<synchronous>, transform_indices = @transform_3, window_bounds = array<i64: 32, 4>}, {pipeline_mode = #tpu.pipeline_mode<synchronous>, transform_indices = @transform_4, window_bounds = array<i64: 1, 4>}, {transform_indices = @transform_5, window_bounds = array<i64: 32, 4>}]} {
    %c0 = arith.constant 0 : index
    %c0_0 = arith.constant 0 : index
    %0 = vector.load %arg1[%c0, %c0_0] : memref<32x16xf32, #tpu.memory_space<vmem>>, vector<32x16xf32>
    %c0_1 = arith.constant 0 : index
    %c0_2 = arith.constant 0 : index
    %1 = vector.load %arg2[%c0_1, %c0_2] : memref<16x32xf32, #tpu.memory_space<vmem>>, vector<16x32xf32>
    %cst = arith.constant dense<0.000000e+00> : vector<32x32xf32>
    %2 = tpu.matmul %0, %1, %cst {dimension_numbers = #tpu.dot_dimension_numbers<[1], [0], [0], [1], [0, 0, 1, 1], [], []>} : vector<32x16xf32>, vector<16x32xf32>, vector<32x32xf32> -> vector<32x32xf32>
    %c0_3 = arith.constant 0 : index
    %c0_4 = arith.constant 0 : index
    %3 = vector.load %arg3[%c0_3, %c0_4] : memref<1x32xf32, #tpu.memory_space<vmem>>, vector<1x32xf32>
    %4 = vector.broadcast %3 : vector<1x32xf32> to vector<32x32xf32>
    %5 = arith.addf %2, %4 : vector<32x32xf32>
    %cst_5 = arith.constant 0.000000e+00 : f32
    %6 = vector.broadcast %cst_5 : f32 to vector<32x32xf32>
    %7 = arith.maximumf %5, %6 : vector<32x32xf32>
    %c0_6 = arith.constant 0 : index
    %c0_7 = arith.constant 0 : index
    %8 = vector.load %arg4[%c0_6, %c0_7] : memref<32x4xf32, #tpu.memory_space<vmem>>, vector<32x4xf32>
    %cst_8 = arith.constant dense<0.000000e+00> : vector<32x4xf32>
    %9 = tpu.matmul %7, %8, %cst_8 {dimension_numbers = #tpu.dot_dimension_numbers<[1], [0], [0], [1], [0, 0, 1, 1], [], []>} : vector<32x32xf32>, vector<32x4xf32>, vector<32x4xf32> -> vector<32x4xf32>
    %c0_9 = arith.constant 0 : index
    %c0_10 = arith.constant 0 : index
    %10 = vector.load %arg5[%c0_9, %c0_10] : memref<1x4xf32, #tpu.memory_space<vmem>>, vector<1x4xf32>
    %11 = vector.broadcast %10 : vector<1x4xf32> to vector<32x4xf32>
    %12 = arith.addf %9, %11 : vector<32x4xf32>
    %c0_11 = arith.constant 0 : index
    %c0_12 = arith.constant 0 : index
    %13 = vector.load %arg6[%c0_11, %c0_12] : memref<32x4xf32, #tpu.memory_space<vmem>>, vector<32x4xf32>
    tpu.vector_store %arg6[%c0_11, %c0_12], %12 {strides = array<i32>} : memref<32x4xf32, #tpu.memory_space<vmem>>, vector<32x4xf32>,
    return
  }
  func.func @transform_0(%arg0: i32) -> (i32, i32) {
    %c0_i32 = arith.constant 0 : i32
    %c0_i32_0 = arith.constant 0 : i32
    return %arg0, %c0_i32 : i32, i32
  }
  func.func @transform_1(%arg0: i32) -> (i32, i32) {
    %c0_i32 = arith.constant 0 : i32
    %c0_i32_0 = arith.constant 0 : i32
    %c0_i32_1 = arith.constant 0 : i32
    return %c0_i32, %c0_i32_0 : i32, i32
  }
  func.func @transform_2(%arg0: i32) -> (i32, i32) {
    %c0_i32 = arith.constant 0 : i32
    %c0_i32_0 = arith.constant 0 : i32
    %c0_i32_1 = arith.constant 0 : i32
    return %c0_i32, %c0_i32_0 : i32, i32
  }
  func.func @transform_3(%arg0: i32) -> (i32, i32) {
    %c0_i32 = arith.constant 0 : i32
    %c0_i32_0 = arith.constant 0 : i32
    %c0_i32_1 = arith.constant 0 : i32
    return %c0_i32, %c0_i32_0 : i32, i32
  }
  func.func @transform_4(%arg0: i32) -> (i32, i32) {
    %c0_i32 = arith.constant 0 : i32
    %c0_i32_0 = arith.constant 0 : i32
    %c0_i32_1 = arith.constant 0 : i32
    return %c0_i32, %c0_i32_0 : i32, i32
  }
  func.func @transform_5(%arg0: i32) -> (i32, i32) {
    %c0_i32 = arith.constant 0 : i32
    %c0_i32_0 = arith.constant 0 : i32
    return %arg0, %c0_i32 : i32, i32
  }
}

</mosaic_0001>

<llo_original>
// kernel: tpu_custom_call.1
$region0: #{tpu_custom_call.1}
  #allocation0 [shape = 'u32[]', space=smem, size = 0x4, offset = 0x4, fixed_abs, tag = 'smem constant byte address 0x4 - core index']
  #allocation1 [shape = 'u32[72,128]{1,0:T(1,128)}', space=vmem, size = 0x9000, scoped, tag = 'internal scratch']
  %s0 = inlined_call_operand.vmem [shape: f32[8,16], index: 0, kind: input, shape index: {}]
  %s1 = inlined_call_operand.vmem [shape: f32[16,32], index: 1, kind: input, shape index: {}]
  %s2 = inlined_call_operand.vmem [shape: f32[1,32], index: 2, kind: input, shape index: {}]
  %s3 = inlined_call_operand.vmem [shape: f32[32,4], index: 3, kind: input, shape index: {}]
  %s4 = inlined_call_operand.vmem [shape: f32[1,4], index: 4, kind: input, shape index: {}]
  %s5 = inlined_call_operand.vmem [shape: f32[8,4], index: 5, kind: output, shape index: {}]
  %s6 = sld [smem:[#allocation0]]
  $region64: #{tpu_custom_call.1} parent=0
    _
  %s8 = ssub.s32 1, %s6
  %s9 = scalar_select 0, %s8, %s6
  $region1: #{tpu_custom_call.1} parent=0
    #allocation2 [shape = 'u8[16384]{0}', space=vmem, size = 0x4000, scoped, tag = 'output window, operand 0, single buffered']
    // Predicated region
    $region2: #{tpu_custom_call.1} parent=1 // pred_check
      _
    $region3: #{tpu_custom_call.1} parent=1 // pred_check_branch
      %11 = sbr.rel (0) target = $region5
    $region4: #{tpu_custom_call.1} parent=1 // pred_region
      _
    $region5: #{tpu_custom_call.1} parent=1 // pred_fallthru
      _
    // Predicated region
    $region6: #{tpu_custom_call.1} parent=1 // pred_check
      _
    $region7: #{tpu_custom_call.1} parent=1 // pred_check_branch
      %13 = sbr.rel (0) target = $region9
    $region8: #{tpu_custom_call.1} parent=1 // pred_region
      _
    $region9: #{tpu_custom_call.1} parent=1 // pred_fallthru
      _
    // Predicated region
    $region10: #{tpu_custom_call.1} parent=1 // pred_check
      _
    $region11: #{tpu_custom_call.1} parent=1 // pred_check_branch
      %15 = sbr.rel (0) target = $region13
    $region12: #{tpu_custom_call.1} parent=1 // pred_region
      _
    $region13: #{tpu_custom_call.1} parent=1 // pred_fallthru
      _
    // Predicated region
    $region14: #{tpu_custom_call.1} parent=1 // pred_check
      _
    $region15: #{tpu_custom_call.1} parent=1 // pred_check_branch
      %17 = sbr.rel (0) target = $region17
    $region16: #{tpu_custom_call.1} parent=1 // pred_region
      _
    $region17: #{tpu_custom_call.1} parent=1 // pred_fallthru
      _
    // Predicated region
    $region18: #{tpu_custom_call.1} parent=1 // pred_check
      _
    $region19: #{tpu_custom_call.1} parent=1 // pred_check_branch
      %19 = sbr.rel (0) target = $region21
    $region20: #{tpu_custom_call.1} parent=1 // pred_region
      _
    $region21: #{tpu_custom_call.1} parent=1 // pred_fallthru
      _
    %v20 = vld [vmem:[%s0] sm:$0xff]
    %v21 = vld [vmem:[%s0 + $0x8] sm:$0xff]
    %v22 = vld [vmem:[%s0 + $0x10] sm:$0xff]
    %v23 = vld [vmem:[%s0 + $0x18] sm:$0xff]
    %v24 = vld [vmem:[%s1] sm:$0xff]
    %v25 = vld [vmem:[%s1 + $0x8] sm:$0xff]
    %v26 = vld [vmem:[%s2] sm:$0x1]
    %v28 = vperm.slane %v26, 0
    %vm30 = vcmask 130048
    %v32 = vsel %vm30, %v20, 0
    %v35 = vsel %vm30, %v21, 0
    %v38 = vsel %vm30, %v22, 0
    %v41 = vsel %vm30, %v23, 0
    %43 = vmatpush.msra.mxu0 0.0
    %44 = vmatpush.msra.mxu0 0.0
    %45 = vmatpush.msra.mxu0 0.0
    %46 = vmatpush.msra.mxu0 0.0
    %47 = vmatpush.msra.mxu0 0.0
    %48 = vmatpush.msra.mxu0 0.0
    %49 = vmatpush.msra.mxu0 0.0
    %50 = vmatpush.msra.mxu0 0.0
    %51 = vmatpush.msra.mxu0 0.0
    %52 = vmatpush.msra.mxu0 0.0
    %53 = vmatpush.msra.mxu0 0.0
    %54 = vmatpush.msra.mxu0 0.0
    %55 = vmatpush.msra.mxu0 0.0
    %56 = vmatpush.msra.mxu0 0.0
    %57 = vmatpush.msra.mxu0 %v25
    %58 = vmatpush.msra.mxu0 %v24
    %59 = vmatmul.f32.gmra.mxu0 %v32
    %v60 = vpop.f32.mrf.mxu0
    %v61 = vadd.f32 %v28, %v60
    %62 = vmatmul.f32.gmra.mxu0 %v35
    %v63 = vpop.f32.mrf.mxu0
    %v64 = vadd.f32 %v28, %v63
    %65 = vmatmul.f32.gmra.mxu0 %v38
    %v66 = vpop.f32.mrf.mxu0
    %v67 = vadd.f32 %v28, %v66
    %68 = vmatmul.f32.gmra.mxu0 %v41
    %v69 = vpop.f32.mrf.mxu0
    %v70 = vadd.f32 %v28, %v69
    %71 = vdwg.mxu0
    %v72 = vmax.f32 %v61, 0.0
    %v73 = vmax.f32 %v64, 0.0
    %v74 = vmax.f32 %v67, 0.0
    %v75 = vmax.f32 %v70, 0.0
    %v76 = vld [vmem:[%s3] sm:$0xff]
    %v77 = vld [vmem:[%s3 + $0x8] sm:$0xff]
    %v78 = vld [vmem:[%s3 + $0x10] sm:$0xff]
    %v79 = vld [vmem:[%s3 + $0x18] sm:$0xff]
    %v80 = vld [vmem:[%s4] sm:$0x1]
    %v82 = vperm.slane %v80, 0
    %vm84 = vcmask 261120
    %v86 = vsel %vm84, %v72, 0
    %v89 = vsel %vm84, %v73, 0
    %v92 = vsel %vm84, %v74, 0
    %v95 = vsel %vm84, %v75, 0
    %97 = vmatpush.msra.mxu0 0.0
    %98 = vmatpush.msra.mxu0 0.0
    %99 = vmatpush.msra.mxu0 0.0
    %100 = vmatpush.msra.mxu0 0.0
    %101 = vmatpush.msra.mxu0 0.0
    %102 = vmatpush.msra.mxu0 0.0
    %103 = vmatpush.msra.mxu0 0.0
    %104 = vmatpush.msra.mxu0 0.0
    %105 = vmatpush.msra.mxu0 0.0
    %106 = vmatpush.msra.mxu0 0.0
    %107 = vmatpush.msra.mxu0 0.0
    %108 = vmatpush.msra.mxu0 0.0
    %109 = vmatpush.msra.mxu0 %v79
    %110 = vmatpush.msra.mxu0 %v78
    %111 = vmatpush.msra.mxu0 %v77
    %112 = vmatpush.msra.mxu0 %v76
    %113 = vmatmul.f32.gmra.mxu0 %v86
    %v114 = vpop.f32.mrf.mxu0
    %v115 = vadd.f32 %v82, %v114
    %116 = vmatmul.f32.gmra.mxu0 %v89
    %v117 = vpop.f32.mrf.mxu0
    %v118 = vadd.f32 %v82, %v117
    %119 = vmatmul.f32.gmra.mxu0 %v92
    %v120 = vpop.f32.mrf.mxu0
    %v121 = vadd.f32 %v82, %v120
    %122 = vmatmul.f32.gmra.mxu0 %v95
    %v123 = vpop.f32.mrf.mxu0
    %v124 = vadd.f32 %v82, %v123
    %125 = vdwg.mxu0
    %vm126 = vcmask 31744
    %127 = vst.msk [vmem:[#allocation2] sm:$0xff] %vm126, %v115
    %128 = vst.msk [vmem:[#allocation2 + $0x8] sm:$0xff] %vm126, %v118
    %129 = vst.msk [vmem:[#allocation2 + $0x10] sm:$0xff] %vm126, %v121
    %130 = vst.msk [vmem:[#allocation2 + $0x18] sm:$0xff] %vm126, %v124
    // Predicated region
    $region22: #{tpu_custom_call.1} parent=1 // pred_check
      _
    $region23: #{tpu_custom_call.1} parent=1 // pred_check_branch
      %132 = sbr.rel (0) target = $region25
    $region24: #{tpu_custom_call.1} parent=1 // pred_region
      // Predicated region
      $region26: #{tpu_custom_call.1} parent=24 // pred_check
        _
      $region27: #{tpu_custom_call.1} parent=24 // pred_check_branch
        %134 = sbr.rel (0) target = $region29
      $region28: #{tpu_custom_call.1} parent=24 // pred_region
        // Predicated region
        $region30: #{tpu_custom_call.1} parent=28 // pred_check
          _
        $region31: #{tpu_custom_call.1} parent=28 // pred_check_branch
          %136 = sbr.rel (0) target = $region33
        $region32: #{tpu_custom_call.1} parent=28 // pred_region
          // Predicated region
          $region45: #{tpu_custom_call.1} parent=32 // pred_check
            _
          $region46: #{tpu_custom_call.1} parent=32 // pred_check_branch
            %152 = sbr.rel (0) target = $region48
          $region47: #{tpu_custom_call.1} parent=32 // pred_region
            loop: start=0, step=1, limit=1
            $region49: #{tpu_custom_call.1} parent=47 // loop_pre_header
              _
            $region50: #{tpu_custom_call.1} parent=47 // loop_header
              %s154 = sphi 0, %s158
              %p155 = scmp.ge.s32.totalorder %s154, 1
              %s159 = sphi [#allocation2], [#allocation2]
              %s160 = sphi %s5, %s5
            $region51: #{tpu_custom_call.1} parent=47 // loop_header_branch
              %157 = sbr.rel (%p155) target = $region55
            $region52: #{tpu_custom_call.1} parent=47 // loop_body
              %v161 = vld [vmem:[%s159] sm:$0xff]
              %162 = vst [vmem:[%s160] sm:$0xff] %v161
            $region53: #{tpu_custom_call.1} parent=47 // loop_footer
              %s158 = sadd.s32 1, %s154
            $region54: #{tpu_custom_call.1} parent=47 // loop_footer_branch
              %153 = sbr.rel target = $region50
            $region55: #{tpu_custom_call.1} parent=47 // loop_exit
              _
          $region48: #{tpu_custom_call.1} parent=32 // pred_fallthru
            _
          // Predicated region
          $region56: #{tpu_custom_call.1} parent=32 // pred_check
            _
          $region57: #{tpu_custom_call.1} parent=32 // pred_check_branch
            %164 = sbr.rel target = $region59
          $region58: #{tpu_custom_call.1} parent=32 // pred_region
            _
          $region59: #{tpu_custom_call.1} parent=32 // pred_fallthru
            _
        $region33: #{tpu_custom_call.1} parent=28 // pred_fallthru
          _
        // Predicated region
        $region34: #{tpu_custom_call.1} parent=28 // pred_check
          _
        $region35: #{tpu_custom_call.1} parent=28 // pred_check_branch
          %138 = sbr.rel target = $region37
        $region36: #{tpu_custom_call.1} parent=28 // pred_region
          %s140 = ssub.s32 256, 1
          loop: start=0, step=1, limit=1
          $region38: #{tpu_custom_call.1} parent=36 // loop_pre_header
            _
          $region39: #{tpu_custom_call.1} parent=36 // loop_header
            %s142 = sphi 0, %s146
            %p143 = scmp.ge.s32.totalorder %s142, 1
            %s147 = sphi [#allocation2], [#allocation2]
            %s148 = sphi %s5, %s5
          $region40: #{tpu_custom_call.1} parent=36 // loop_header_branch
            %145 = sbr.rel (%p143) target = $region44
          $region41: #{tpu_custom_call.1} parent=36 // loop_body
            %v149 = vld [vmem:[%s147] sm:%s140]
            %150 = vst [vmem:[%s148] sm:%s140] %v149
          $region42: #{tpu_custom_call.1} parent=36 // loop_footer
            %s146 = sadd.s32 1, %s142
          $region43: #{tpu_custom_call.1} parent=36 // loop_footer_branch
            %141 = sbr.rel target = $region39
          $region44: #{tpu_custom_call.1} parent=36 // loop_exit
            _
        $region37: #{tpu_custom_call.1} parent=28 // pred_fallthru
          _
      $region29: #{tpu_custom_call.1} parent=24 // pred_fallthru
        _
      %165 = vnop
    $region25: #{tpu_custom_call.1} parent=1 // pred_fallthru
      _
    // Predicated region
    $region60: #{tpu_custom_call.1} parent=1 // pred_check
      _
    $region61: #{tpu_custom_call.1} parent=1 // pred_check_branch
      %167 = sbr.rel (0) target = $region63
    $region62: #{tpu_custom_call.1} parent=1 // pred_region
      _
    $region63: #{tpu_custom_call.1} parent=1 // pred_fallthru
      _

</llo_original>
